<compile_context>
chip_gen: v6e
topology: v6e:2x2x1
jax: 0.10.0
libtpu: 0.0.40
codegen_flags: <defaults>
</compile_context>

<pallas_src>
import functools

import jax
import jax.numpy as jnp
from jax import lax
from jax.experimental import pallas as pl
from jax.experimental.pallas import tpu as pltpu


def _gelu_tanh(x):
    # matches torch.nn.functional.gelu(x, approximate='tanh')
    c = jnp.sqrt(2.0 / jnp.pi).astype(x.dtype)
    return 0.5 * x * (1.0 + jnp.tanh(c * (x + 0.044715 * x * x * x)))


def _round_up(x, m):
    return (x + m - 1) // m * m


def _cdiv(a, b):
    return (a + b - 1) // b


# ---------------------------------------------------------------------------
# Kernels
# ---------------------------------------------------------------------------

def _mlp_resident_kernel(x_ref, w1_ref, b1_ref, w2t_ref, b2_ref, o_ref):
    # x_ref:   (tm, H)      row tile of flattened tokens
    # w1_ref:  (I_pad, H)   fc1.weight, PyTorch (out, in) layout, VMEM-resident
    # b1_ref:  (1, I_pad)   fc1.bias (f32)
    # w2t_ref: (I_pad, H)   fc2.weight pre-transposed to [I, H], VMEM-resident
    # b2_ref:  (1, H)       fc2.bias (f32)
    # o_ref:   (tm, H)
    h = lax.dot_general(
        x_ref[...], w1_ref[...],
        dimension_numbers=(((1,), (1,)), ((), ())),
        preferred_element_type=jnp.float32)
    h = _gelu_tanh(h + b1_ref[...])
    out = lax.dot_general(
        h.astype(w2t_ref.dtype), w2t_ref[...],
        dimension_numbers=(((1,), (0,)), ((), ())),
        preferred_element_type=jnp.float32)
    o_ref[...] = (out + b2_ref[...]).astype(o_ref.dtype)


def _mlp_chunked_kernel(x_ref, w1_ref, b1_ref, w2t_ref, b2_ref, o_ref, acc_ref):
    # Same as above but fc1/fc2 weights are streamed in (ti, H) row chunks and
    # partial fc2 products accumulate in an f32 scratch across the I axis.
    k = pl.program_id(1)

    h = lax.dot_general(
        x_ref[...], w1_ref[...],
        dimension_numbers=(((1,), (1,)), ((), ())),
        preferred_element_type=jnp.float32)
    h = _gelu_tanh(h + b1_ref[...])
    partial = lax.dot_general(
        h.astype(w2t_ref.dtype), w2t_ref[...],
        dimension_numbers=(((1,), (0,)), ((), ())),
        preferred_element_type=jnp.float32)

    @pl.when(k == 0)
    def _init():
        # Fold fc2 bias into the first partial: no (tm, H) zero-fill, no extra add.
        acc_ref[...] = partial + b2_ref[...]

    @pl.when(k != 0)
    def _accumulate():
        acc_ref[...] += partial

    @pl.when(k == pl.num_programs(1) - 1)
    def _finalize():
        o_ref[...] = acc_ref[...].astype(o_ref.dtype)


# ---------------------------------------------------------------------------
# Wrapper helpers
# ---------------------------------------------------------------------------

def _maybe_buffered_spec(block_shape, index_map, buffer_count):
    # pipeline_mode hint: 1 buffer for constant-index (resident) blocks,
    # 3 buffers for streamed weight chunks. Falls back to the default spec if
    # the running JAX does not expose the pipeline_mode API.
    try:
        return pl.BlockSpec(block_shape, index_map,
                            pipeline_mode=pl.Buffered(buffer_count))
    except Exception:  # noqa: BLE001 - defensive: API availability varies
        return pl.BlockSpec(block_shape, index_map)


def _choose_tm(M, requested):
    tm = max(8, min(requested, _round_up(M, 8)))
    # v7x has 2 TensorCores; keep at least 2 row tiles once there is real work
    # so the "parallel" row axis shards across both cores.
    if M > 256 and _cdiv(M, tm) < 2:
        tm = _round_up(_cdiv(M, 2), 8)
    return tm


def _choose_ti(I_pad, requested):
    # Largest multiple of 128 <= requested that divides I_pad (128 always does),
    # so no extra intermediate padding / wasted MXU work is introduced.
    best = 128
    for cand in range(128, min(requested, I_pad) + 1, 128):
        if I_pad % cand == 0:
            best = cand
    return best


def _vmem_capacity_bytes():
    try:
        return int(pltpu.get_tpu_info().vmem_capacity_bytes)
    except Exception:  # noqa: BLE001 - be conservative if query unavailable
        return 64 * 1024 * 1024  # v7x per-TC VMEM


def _vmem_estimate(tm, ti, H, x_itemsize, w_itemsize, n_wbuf, with_acc):
    use = 2 * tm * H * x_itemsize            # x row tile (double buffered)
    use += 2 * tm * H * x_itemsize           # out row tile (double buffered)
    use += 2 * n_wbuf * ti * H * w_itemsize  # w1 + w2t chunks
    use += 2 * (ti + H) * 4 * 2              # biases (f32, double buffered)
    use += tm * ti * (4 + w_itemsize)        # f32 h + its cast (compiler temps)
    use += tm * H * 4                        # f32 fc2 result temp
    if with_acc:
        use += tm * H * 4                    # explicit f32 accumulator scratch
    return use


# ---------------------------------------------------------------------------
# Public entry point
# ---------------------------------------------------------------------------

@functools.partial(jax.jit, static_argnames=("tm", "ti", "weights_resident"))
def siglip_mlp(hidden_states, w1, b1, w2, b2, *, tm=512, ti=512,
               weights_resident=None):
    """SiglipMLP forward: fc2(gelu_tanh(fc1(x))).

    hidden_states: [B, S, H]; w1: [I, H]; b1: [I]; w2: [H, I]; b2: [H]
    (nn.Linear (out_features, in_features) weight layout).
    """
    B, S, H = hidden_states.shape
    I = w1.shape[0]
    dtype = hidden_states.dtype
    x_itemsize = jnp.dtype(dtype).itemsize
    w_itemsize = jnp.dtype(w1.dtype).itemsize

    M = B * S
    x = hidden_states.reshape(M, H)

    tm = _choose_tm(M, tm)
    M_pad = _round_up(M, tm)
    if M_pad != M:
        x = jnp.pad(x, ((0, M_pad - M), (0, 0)))

    # Lane-align the intermediate dim once; chunk sizes divide it exactly.
    I_pad = _round_up(I, 128)

    vmem_cap = _vmem_capacity_bytes()
    # Decide: full weights resident in VMEM (single k step, weights DMA'd once)
    # vs. streaming (ti, H) chunks with an f32 accumulator across the I axis.
    if weights_resident is None:
        resident_est = _vmem_estimate(tm, I_pad, H, x_itemsize, w_itemsize,
                                      n_wbuf=2, with_acc=False)
        weights_resident = resident_est <= int(vmem_cap * 0.55)

    if weights_resident:
        ti = I_pad
    else:
        ti = _choose_ti(I_pad, ti)

    # Pre-transpose fc2.weight to [I, H] (one-time XLA op) so weight chunks are
    # contiguous row slabs and the fc2 matmul is a canonical [M,K] x [K,N].
    w2t = jnp.swapaxes(w2, 0, 1)

    if I_pad != I:
        # Zero-padded intermediate columns hit zero w2t rows -> no effect.
        w1 = jnp.pad(w1, ((0, I_pad - I), (0, 0)))
        b1 = jnp.pad(b1, ((0, I_pad - I),))
        w2t = jnp.pad(w2t, ((0, I_pad - I), (0, 0)))

    # Biases in f32 so the kernel adds straight onto f32 accumulators.
    b1_2d = b1.reshape(1, I_pad).astype(jnp.float32)
    b2_2d = b2.reshape(1, H).astype(jnp.float32)

    n_row_tiles = M_pad // tm
    n_k = I_pad // ti

    n_wbuf = 2 if weights_resident else 3
    est = _vmem_estimate(tm, ti, H, x_itemsize, w_itemsize,
                         n_wbuf=n_wbuf, with_acc=not weights_resident)
    vmem_limit = int(min(max(est + est // 2 + (2 << 20), 8 << 20),
                         int(vmem_cap * 0.85)))

    weight_bytes = (w1.size + w2t.size) * w_itemsize
    weight_reads = 1 if weights_resident else n_row_tiles
    cost = pl.CostEstimate(
        flops=4 * M * H * I,                      # two matmuls, 2*M*H*I each
        transcendentals=M * I,                    # tanh in GELU
        bytes_accessed=(2 * M * H * x_itemsize    # x + out
                        + weight_reads * weight_bytes
                        + (I_pad + H) * 4),       # biases
    )

    if weights_resident:
        grid = (n_row_tiles,)
        in_specs = [
            pl.BlockSpec((tm, H), lambda i: (i, 0)),                     # x tile
            _maybe_buffered_spec((I_pad, H), lambda i: (0, 0), 1),       # fc1.w
            _maybe_buffered_spec((1, I_pad), lambda i: (0, 0), 1),       # fc1.b
            _maybe_buffered_spec((I_pad, H), lambda i: (0, 0), 1),       # fc2.w^T
            _maybe_buffered_spec((1, H), lambda i: (0, 0), 1),           # fc2.b
        ]
        out_specs = pl.BlockSpec((tm, H), lambda i: (i, 0))
        scratch_shapes = []
        kernel = _mlp_resident_kernel
        dim_sem = ("parallel",)
    else:
        grid = (n_row_tiles, n_k)
        in_specs = [
            pl.BlockSpec((tm, H), lambda i, k: (i, 0)),                  # x tile
            _maybe_buffered_spec((ti, H), lambda i, k: (k, 0), 3),       # fc1.w chunk
            pl.BlockSpec((1, ti), lambda i, k: (0, k)),                  # fc1.b chunk
            _maybe_buffered_spec((ti, H), lambda i, k: (k, 0), 3),       # fc2.w^T chunk
            pl.BlockSpec((1, H), lambda i, k: (0, 0)),                   # fc2.b
        ]
        out_specs = pl.BlockSpec((tm, H), lambda i, k: (i, 0))
        scratch_shapes = [pltpu.VMEM((tm, H), jnp.float32)]
        kernel = _mlp_chunked_kernel
        dim_sem = ("parallel", "arbitrary")

    out = pl.pallas_call(
        kernel,
        out_shape=jax.ShapeDtypeStruct((M_pad, H), dtype),
        grid_spec=pltpu.PrefetchScalarGridSpec(
            num_scalar_prefetch=0,
            grid=grid,
            in_specs=in_specs,
            out_specs=out_specs,
            scratch_shapes=scratch_shapes,
        ),
        compiler_params=pltpu.CompilerParams(
            dimension_semantics=dim_sem,
            vmem_limit_bytes=vmem_limit,
        ),
        cost_estimate=cost,
    )(x, w1, b1_2d, w2t, b2_2d)

    return out[:M].reshape(B, S, H)


def reference_mlp(hidden_states, w1, b1, w2, b2):
    h = jnp.einsum("bsh,ih->bsi", hidden_states, w1,
                   precision=lax.Precision.HIGHEST) + b1
    h = _gelu_tanh(h)
    return jnp.einsum("bsi,hi->bsh", h, w2,
                      precision=lax.Precision.HIGHEST) + b2


if __name__ == "__main__":
    # Small SiglipVisionConfig-like shapes: hidden_size=32, intermediate=128.
    # (The kernel itself targets real SigLIP shapes, e.g. H=768/1152, I=3072+.)
    B, S, H, I = 2, 8, 32, 128

    key = jax.random.PRNGKey(0)
    kx, k1, k2, k3, k4 = jax.random.split(key, 5)

    hidden_states = jax.random.normal(kx, (B, S, H), dtype=jnp.float32)
    # nn.Linear-style (out, in) weights, deterministic uniform init.
    w1 = jax.random.uniform(k1, (I, H), jnp.float32, -0.1, 0.1)   # fc1.weight
    b1 = jax.random.uniform(k2, (I,), jnp.float32, -0.1, 0.1)     # fc1.bias
    w2 = jax.random.uniform(k3, (H, I), jnp.float32, -0.1, 0.1)   # fc2.weight
    b2 = jax.random.uniform(k4, (H,), jnp.float32, -0.1, 0.1)     # fc2.bias

    # Path 1: weights fully VMEM-resident (the fast path for real SigLIP).
    out = jax.block_until_ready(siglip_mlp(hidden_states, w1, b1, w2, b2))
    ref = reference_mlp(hidden_states, w1, b1, w2, b2)
    assert out.shape == (B, S, H)
    assert jnp.allclose(out, ref, atol=1e-4, rtol=1e-4), "resident path mismatch"

    # Path 2: I-chunked streaming fallback (exercised explicitly, 2 k-steps).
    I2 = 256
    k5, k6, k7 = jax.random.split(k4, 3)
    w1b = jax.random.uniform(k5, (I2, H), jnp.float32, -0.1, 0.1)
    b1b = jax.random.uniform(k6, (I2,), jnp.float32, -0.1, 0.1)
    w2b = jax.random.uniform(k7, (H, I2), jnp.float32, -0.1, 0.1)
    out_c = jax.block_until_ready(
        siglip_mlp(hidden_states, w1b, b1b, w2b, b2,
                   ti=128, weights_resident=False))
    ref_c = reference_mlp(hidden_states, w1b, b1b, w2b, b2)
    assert jnp.allclose(out_c, ref_c, atol=1e-4, rtol=1e-4), "chunked path mismatch"

    print("KERNEL_OK")
</pallas_src>

<mosaic_0001>
module attributes {stable_mosaic.version = 11 : i64} {
  func.func @_mlp_resident_kernel(%arg0: i32, %arg1: memref<16x32xf32, #tpu.memory_space<vmem>>, %arg2: memref<128x32xf32, #tpu.memory_space<vmem>>, %arg3: memref<1x128xf32, #tpu.memory_space<vmem>>, %arg4: memref<128x32xf32, #tpu.memory_space<vmem>>, %arg5: memref<1x32xf32, #tpu.memory_space<vmem>>, %arg6: memref<16x32xf32, #tpu.memory_space<vmem>>) attributes {dimension_semantics = [#tpu.dimension_semantics<parallel>], iteration_bounds = array<i64: 1>, scalar_prefetch = 0 : i64, scratch_operands = 0 : i64, tpu.core_type = #tpu.core_type<tc>, window_params = [{transform_indices = @transform_0, window_bounds = array<i64: 16, 32>}, {pipeline_mode = #tpu.pipeline_mode<synchronous>, transform_indices = @transform_1, window_bounds = array<i64: 128, 32>}, {pipeline_mode = #tpu.pipeline_mode<synchronous>, transform_indices = @transform_2, window_bounds = array<i64: 1, 128>}, {pipeline_mode = #tpu.pipeline_mode<synchronous>, transform_indices = @transform_3, window_bounds = array<i64: 128, 32>}, {pipeline_mode = #tpu.pipeline_mode<synchronous>, transform_indices = @transform_4, window_bounds = array<i64: 1, 32>}, {transform_indices = @transform_5, window_bounds = array<i64: 16, 32>}]} {
    %c0 = arith.constant 0 : index
    %c0_0 = arith.constant 0 : index
    %0 = vector.load %arg1[%c0, %c0_0] : memref<16x32xf32, #tpu.memory_space<vmem>>, vector<16x32xf32>
    %c0_1 = arith.constant 0 : index
    %c0_2 = arith.constant 0 : index
    %1 = vector.load %arg2[%c0_1, %c0_2] : memref<128x32xf32, #tpu.memory_space<vmem>>, vector<128x32xf32>
    %cst = arith.constant dense<0.000000e+00> : vector<16x128xf32>
    %2 = tpu.matmul %0, %1, %cst {dimension_numbers = #tpu.dot_dimension_numbers<[1], [1], [0], [0], [0, 0, 1, 0], [], []>} : vector<16x32xf32>, vector<128x32xf32>, vector<16x128xf32> -> vector<16x128xf32>
    %c0_3 = arith.constant 0 : index
    %c0_4 = arith.constant 0 : index
    %3 = vector.load %arg3[%c0_3, %c0_4] : memref<1x128xf32, #tpu.memory_space<vmem>>, vector<1x128xf32>
    %4 = vector.broadcast %3 : vector<1x128xf32> to vector<16x128xf32>
    %5 = arith.addf %2, %4 : vector<16x128xf32>
    %cst_5 = arith.constant 0.636619746 : f32
    %6 = math.sqrt %cst_5 : f32
    %cst_6 = arith.constant 5.000000e-01 : f32
    %7 = vector.broadcast %cst_6 : f32 to vector<16x128xf32>
    %8 = arith.mulf %7, %5 : vector<16x128xf32>
    %cst_7 = arith.constant 4.471500e-02 : f32
    %9 = vector.broadcast %cst_7 : f32 to vector<16x128xf32>
    %10 = arith.mulf %9, %5 : vector<16x128xf32>
    %11 = arith.mulf %10, %5 : vector<16x128xf32>
    %12 = arith.mulf %11, %5 : vector<16x128xf32>
    %13 = arith.addf %5, %12 : vector<16x128xf32>
    %14 = vector.broadcast %6 : f32 to vector<16x128xf32>
    %15 = arith.mulf %14, %13 : vector<16x128xf32>
    %16 = math.tanh %15 : vector<16x128xf32>
    %cst_8 = arith.constant 1.000000e+00 : f32
    %17 = vector.broadcast %cst_8 : f32 to vector<16x128xf32>
    %18 = arith.addf %17, %16 : vector<16x128xf32>
    %19 = arith.mulf %8, %18 : vector<16x128xf32>
    %c0_9 = arith.constant 0 : index
    %c0_10 = arith.constant 0 : index
    %20 = vector.load %arg4[%c0_9, %c0_10] : memref<128x32xf32, #tpu.memory_space<vmem>>, vector<128x32xf32>
    %cst_11 = arith.constant dense<0.000000e+00> : vector<16x32xf32>
    %21 = tpu.matmul %19, %20, %cst_11 {dimension_numbers = #tpu.dot_dimension_numbers<[1], [0], [0], [1], [0, 0, 1, 1], [], []>} : vector<16x128xf32>, vector<128x32xf32>, vector<16x32xf32> -> vector<16x32xf32>
    %c0_12 = arith.constant 0 : index
    %c0_13 = arith.constant 0 : index
    %22 = vector.load %arg5[%c0_12, %c0_13] : memref<1x32xf32, #tpu.memory_space<vmem>>, vector<1x32xf32>
    %23 = vector.broadcast %22 : vector<1x32xf32> to vector<16x32xf32>
    %24 = arith.addf %21, %23 : vector<16x32xf32>
    %c0_14 = arith.constant 0 : index
    %c0_15 = arith.constant 0 : index
    %25 = vector.load %arg6[%c0_14, %c0_15] : memref<16x32xf32, #tpu.memory_space<vmem>>, vector<16x32xf32>
    tpu.vector_store %arg6[%c0_14, %c0_15], %24 {strides = array<i32>} : memref<16x32xf32, #tpu.memory_space<vmem>>, vector<16x32xf32>,
    return
  }
  func.func @transform_0(%arg0: i32) -> (i32, i32) {
    %c0_i32 = arith.constant 0 : i32
    %c0_i32_0 = arith.constant 0 : i32
    return %arg0, %c0_i32 : i32, i32
  }
  func.func @transform_1(%arg0: i32) -> (i32, i32) {
    %c0_i32 = arith.constant 0 : i32
    %c0_i32_0 = arith.constant 0 : i32
    %c0_i32_1 = arith.constant 0 : i32
    return %c0_i32, %c0_i32_0 : i32, i32
  }
  func.func @transform_2(%arg0: i32) -> (i32, i32) {
    %c0_i32 = arith.constant 0 : i32
    %c0_i32_0 = arith.constant 0 : i32
    %c0_i32_1 = arith.constant 0 : i32
    return %c0_i32, %c0_i32_0 : i32, i32
  }
  func.func @transform_3(%arg0: i32) -> (i32, i32) {
    %c0_i32 = arith.constant 0 : i32
    %c0_i32_0 = arith.constant 0 : i32
    %c0_i32_1 = arith.constant 0 : i32
    return %c0_i32, %c0_i32_0 : i32, i32
  }
  func.func @transform_4(%arg0: i32) -> (i32, i32) {
    %c0_i32 = arith.constant 0 : i32
    %c0_i32_0 = arith.constant 0 : i32
    %c0_i32_1 = arith.constant 0 : i32
    return %c0_i32, %c0_i32_0 : i32, i32
  }
  func.func @transform_5(%arg0: i32) -> (i32, i32) {
    %c0_i32 = arith.constant 0 : i32
    %c0_i32_0 = arith.constant 0 : i32
    return %arg0, %c0_i32 : i32, i32
  }
}

</mosaic_0001>

<llo_original>
// kernel: siglip_mlp.1
$region0: #{siglip_mlp.1}
  #allocation0 [shape = 'u32[]', space=smem, size = 0x4, offset = 0x4, fixed_abs, tag = 'smem constant byte address 0x4 - core index']
  #allocation1 [shape = 'u32[144,128]{1,0:T(1,128)}', space=vmem, size = 0x12000, scoped, tag = 'internal scratch']
  %s0 = inlined_call_operand.vmem [shape: f32[16,32], index: 0, kind: input, shape index: {}]
  %s1 = inlined_call_operand.vmem [shape: f32[128,32], index: 1, kind: input, shape index: {}]
  %s2 = inlined_call_operand.vmem [shape: f32[1,128], index: 2, kind: input, shape index: {}]
  %s3 = inlined_call_operand.vmem [shape: f32[128,32], index: 3, kind: input, shape index: {}]
  %s4 = inlined_call_operand.vmem [shape: f32[1,32], index: 4, kind: input, shape index: {}]
  %s5 = inlined_call_operand.hbm [shape: f32[16,32], index: 5, kind: output, shape index: {}]
  %s6 = sld [smem:[#allocation0]]
  $region30: #{siglip_mlp.1} parent=0
    _
  %s8 = ssub.s32 1, %s6
  %s9 = scalar_select 0, %s8, %s6
  $region1: #{siglip_mlp.1} parent=0
    #allocation2 [shape = 'u8[8192]{0}', space=vmem, size = 0x2000, scoped, tag = 'output window, operand 0, single buffered']
    #allocation3 [shape = 's32[1]{0}', space=sflag, size = 0x4, scoped, tag = 'scoped memory for siglip_mlp.1']
    %10 = vsyncpa [#allocation3], 0
    // Predicated region
    $region2: #{siglip_mlp.1} parent=1 // pred_check
      _
    $region3: #{siglip_mlp.1} parent=1 // pred_check_branch
      %12 = sbr.rel (0) target = $region5
    $region4: #{siglip_mlp.1} parent=1 // pred_region
      _
    $region5: #{siglip_mlp.1} parent=1 // pred_fallthru
      _
    // Predicated region
    $region6: #{siglip_mlp.1} parent=1 // pred_check
      _
    $region7: #{siglip_mlp.1} parent=1 // pred_check_branch
      %14 = sbr.rel (0) target = $region9
    $region8: #{siglip_mlp.1} parent=1 // pred_region
      _
    $region9: #{siglip_mlp.1} parent=1 // pred_fallthru
      _
    // Predicated region
    $region10: #{siglip_mlp.1} parent=1 // pred_check
      _
    $region11: #{siglip_mlp.1} parent=1 // pred_check_branch
      %16 = sbr.rel (0) target = $region13
    $region12: #{siglip_mlp.1} parent=1 // pred_region
      _
    $region13: #{siglip_mlp.1} parent=1 // pred_fallthru
      _
    // Predicated region
    $region14: #{siglip_mlp.1} parent=1 // pred_check
      _
    $region15: #{siglip_mlp.1} parent=1 // pred_check_branch
      %18 = sbr.rel (0) target = $region17
    $region16: #{siglip_mlp.1} parent=1 // pred_region
      _
    $region17: #{siglip_mlp.1} parent=1 // pred_fallthru
      _
    // Predicated region
    $region18: #{siglip_mlp.1} parent=1 // pred_check
      _
    $region19: #{siglip_mlp.1} parent=1 // pred_check_branch
      %20 = sbr.rel (0) target = $region21
    $region20: #{siglip_mlp.1} parent=1 // pred_region
      _
    $region21: #{siglip_mlp.1} parent=1 // pred_fallthru
      _
    %v21 = vld [vmem:[%s0] sm:$0xff]
    %v22 = vld [vmem:[%s0 + $0x8] sm:$0xff]
    %v23 = vld [vmem:[%s1] sm:$0xff]
    %v24 = vld [vmem:[%s1 + $0x8] sm:$0xff]
    %v25 = vld [vmem:[%s1 + $0x10] sm:$0xff]
    %v26 = vld [vmem:[%s1 + $0x18] sm:$0xff]
    %v27 = vld [vmem:[%s1 + $0x20] sm:$0xff]
    %v28 = vld [vmem:[%s1 + $0x28] sm:$0xff]
    %v29 = vld [vmem:[%s1 + $0x30] sm:$0xff]
    %v30 = vld [vmem:[%s1 + $0x38] sm:$0xff]
    %v31 = vld [vmem:[%s1 + $0x40] sm:$0xff]
    %v32 = vld [vmem:[%s1 + $0x48] sm:$0xff]
    %v33 = vld [vmem:[%s1 + $0x50] sm:$0xff]
    %v34 = vld [vmem:[%s1 + $0x58] sm:$0xff]
    %v35 = vld [vmem:[%s1 + $0x60] sm:$0xff]
    %v36 = vld [vmem:[%s1 + $0x68] sm:$0xff]
    %v37 = vld [vmem:[%s1 + $0x70] sm:$0xff]
    %v38 = vld [vmem:[%s1 + $0x78] sm:$0xff]
    %v39 = vld [vmem:[%s2] sm:$0x1]
    %v41 = vlaneseq
    %v42 = vshrl.u32 %v41, 7
    %v43 = vsub.s32 0, %v42
    %v44 = vrot.slane %v39, %v43
    %vm46 = vcmask 261120
    %v48 = vsel %vm46, %v21, 0
    %v51 = vsel %vm46, %v22, 0
    %v54 = vsel %vm46, %v23, 0
    %v57 = vsel %vm46, %v24, 0
    %v60 = vsel %vm46, %v25, 0
    %v63 = vsel %vm46, %v26, 0
    %v66 = vsel %vm46, %v27, 0
    %v69 = vsel %vm46, %v28, 0
    %v72 = vsel %vm46, %v29, 0
    %v75 = vsel %vm46, %v30, 0
    %v78 = vsel %vm46, %v31, 0
    %v81 = vsel %vm46, %v32, 0
    %v84 = vsel %vm46, %v33, 0
    %v87 = vsel %vm46, %v34, 0
    %v90 = vsel %vm46, %v35, 0
    %v93 = vsel %vm46, %v36, 0
    %v96 = vsel %vm46, %v37, 0
    %v99 = vsel %vm46, %v38, 0
    %101 = vmatprep.subr.mxu0 0.0
    %102 = vmatpush1.xpose.msra.mxu0 %v99
    %103 = vmatprep.subr.mxu0 0.0
    %104 = vmatpush1.xpose.msra.mxu0 %v96
    %105 = vmatprep.subr.mxu0 0.0
    %106 = vmatpush1.xpose.msra.mxu0 %v93
    %107 = vmatprep.subr.mxu0 0.0
    %108 = vmatpush1.xpose.msra.mxu0 %v90
    %109 = vmatprep.subr.mxu0 0.0
    %110 = vmatpush1.xpose.msra.mxu0 %v87
    %111 = vmatprep.subr.mxu0 0.0
    %112 = vmatpush1.xpose.msra.mxu0 %v84
    %113 = vmatprep.subr.mxu0 0.0
    %114 = vmatpush1.xpose.msra.mxu0 %v81
    %115 = vmatprep.subr.mxu0 0.0
    %116 = vmatpush1.xpose.msra.mxu0 %v78
    %117 = vmatprep.subr.mxu0 0.0
    %118 = vmatpush1.xpose.msra.mxu0 %v75
    %119 = vmatprep.subr.mxu0 0.0
    %120 = vmatpush1.xpose.msra.mxu0 %v72
    %121 = vmatprep.subr.mxu0 0.0
    %122 = vmatpush1.xpose.msra.mxu0 %v69
    %123 = vmatprep.subr.mxu0 0.0
    %124 = vmatpush1.xpose.msra.mxu0 %v66
    %125 = vmatprep.subr.mxu0 0.0
    %126 = vmatpush1.xpose.msra.mxu0 %v63
    %127 = vmatprep.subr.mxu0 0.0
    %128 = vmatpush1.xpose.msra.mxu0 %v60
    %129 = vmatprep.subr.mxu0 0.0
    %130 = vmatpush1.xpose.msra.mxu0 %v57
    %131 = vmatprep.subr.mxu0 0.0
    %132 = vmatpush1.xpose.msra.mxu0 %v54
    %133 = vmatprep.subr.mxu0 0.0
    %134 = vmatpush2.xpose.msra.mxu0 0.0
    %135 = vmatprep.subr.mxu0 0.0
    %136 = vmatpush2.xpose.msra.mxu0 0.0
    %137 = vmatprep.subr.mxu0 0.0
    %138 = vmatpush2.xpose.msra.mxu0 0.0
    %139 = vmatprep.subr.mxu0 0.0
    %140 = vmatpush2.xpose.msra.mxu0 0.0
    %141 = vmatprep.subr.mxu0 0.0
    %142 = vmatpush2.xpose.msra.mxu0 0.0
    %143 = vmatprep.subr.mxu0 0.0
    %144 = vmatpush2.xpose.msra.mxu0 0.0
    %145 = vmatprep.subr.mxu0 0.0
    %146 = vmatpush2.xpose.msra.mxu0 0.0
    %147 = vmatprep.subr.mxu0 0.0
    %148 = vmatpush2.xpose.msra.mxu0 0.0
    %149 = vmatprep.subr.mxu0 0.0
    %150 = vmatpush2.xpose.msra.mxu0 0.0
    %151 = vmatprep.subr.mxu0 0.0
    %152 = vmatpush2.xpose.msra.mxu0 0.0
    %153 = vmatprep.subr.mxu0 0.0
    %154 = vmatpush2.xpose.msra.mxu0 0.0
    %155 = vmatprep.subr.mxu0 0.0
    %156 = vmatpush2.xpose.msra.mxu0 0.0
    %157 = vmatprep.subr.mxu0 0.0
    %158 = vmatpush2.xpose.msra.mxu0 0.0
    %159 = vmatprep.subr.mxu0 0.0
    %160 = vmatpush2.xpose.msra.mxu0 0.0
    %161 = vmatprep.subr.mxu0 0.0
    %162 = vmatpush2.xpose.msra.mxu0 0.0
    %163 = vmatprep.subr.mxu0 0.0
    %164 = vmatpush2.xpose.msra.mxu0 0.0
    %165 = vmatprep.mubr.f32.mxu0 0.0
    %166 = vmatmul.mubr.f32.gmra.mxu0 %v48
    %v167 = vpop.f32.mrf.mxu0
    %v168 = vadd.f32 %v44, %v167
    %v169 = vpop.f32.mrf.mxu0
    %170 = vmatprep.mubr.f32.mxu0 0.0
    %171 = vmatmul.mubr.f32.gmra.mxu0 %v51
    %v172 = vpop.f32.mrf.mxu0
    %v173 = vadd.f32 %v44, %v172
    %v174 = vpop.f32.mrf.mxu0
    %175 = vdwg.mxu0
    %v176 = vmul.f32 %v168, 0.5
    %v177 = vmul.f32 %v173, 0.5
    %v178 = vmul.f32 %v168, 0.044715
    %v179 = vmul.f32 %v173, 0.044715
    %v180 = vmul.f32 %v178, %v168
    %v181 = vmul.f32 %v179, %v173
    %v182 = vmul.f32 %v180, %v168
    %v183 = vmul.f32 %v181, %v173
    %v184 = vadd.f32 %v168, %v182
    %v185 = vadd.f32 %v173, %v183
    %v186 = vmul.f32 %v184, 0.7978845
    %v187 = vmul.f32 %v185, 0.7978845
    %v188 = vtanh.pop %v186
    %v189 = vtanh.pop %v187
    %v190 = vadd.f32 %v188, 1.0
    %v191 = vadd.f32 %v189, 1.0
    %v192 = vmul.f32 %v176, %v190
    %v193 = vmul.f32 %v177, %v191
    %v194 = vld [vmem:[%s3] sm:$0xff]
    %v195 = vld [vmem:[%s3 + $0x8] sm:$0xff]
    %v196 = vld [vmem:[%s3 + $0x10] sm:$0xff]
    %v197 = vld [vmem:[%s3 + $0x18] sm:$0xff]
    %v198 = vld [vmem:[%s3 + $0x20] sm:$0xff]
    %v199 = vld [vmem:[%s3 + $0x28] sm:$0xff]
    %v200 = vld [vmem:[%s3 + $0x30] sm:$0xff]
    %v201 = vld [vmem:[%s3 + $0x38] sm:$0xff]
    %v202 = vld [vmem:[%s3 + $0x40] sm:$0xff]
    %v203 = vld [vmem:[%s3 + $0x48] sm:$0xff]
    %v204 = vld [vmem:[%s3 + $0x50] sm:$0xff]
    %v205 = vld [vmem:[%s3 + $0x58] sm:$0xff]
    %v206 = vld [vmem:[%s3 + $0x60] sm:$0xff]
    %v207 = vld [vmem:[%s3 + $0x68] sm:$0xff]
    %v208 = vld [vmem:[%s3 + $0x70] sm:$0xff]
    %v209 = vld [vmem:[%s3 + $0x78] sm:$0xff]
    %v210 = vld [vmem:[%s4] sm:$0x1]
    %v212 = vlaneseq
    %v213 = vshrl.u32 %v212, 7
    %v214 = vsub.s32 0, %v213
    %v215 = vrot.slane %v210, %v214
    %217 = vmatprep.subr.mxu0 0.0
    %218 = vmatpush1.msra.mxu0 %v209
    %219 = vmatprep.subr.mxu0 0.0
    %220 = vmatpush1.msra.mxu0 %v208
    %221 = vmatprep.subr.mxu0 0.0
    %222 = vmatpush1.msra.mxu0 %v207
    %223 = vmatprep.subr.mxu0 0.0
    %224 = vmatpush1.msra.mxu0 %v206
    %225 = vmatprep.subr.mxu0 0.0
    %226 = vmatpush1.msra.mxu0 %v205
    %227 = vmatprep.subr.mxu0 0.0
    %228 = vmatpush1.msra.mxu0 %v204
    %229 = vmatprep.subr.mxu0 0.0
    %230 = vmatpush1.msra.mxu0 %v203
    %231 = vmatprep.subr.mxu0 0.0
    %232 = vmatpush1.msra.mxu0 %v202
    %233 = vmatprep.subr.mxu0 0.0
    %234 = vmatpush1.msra.mxu0 %v201
    %235 = vmatprep.subr.mxu0 0.0
    %236 = vmatpush1.msra.mxu0 %v200
    %237 = vmatprep.subr.mxu0 0.0
    %238 = vmatpush1.msra.mxu0 %v199
    %239 = vmatprep.subr.mxu0 0.0
    %240 = vmatpush1.msra.mxu0 %v198
    %241 = vmatprep.subr.mxu0 0.0
    %242 = vmatpush1.msra.mxu0 %v197
    %243 = vmatprep.subr.mxu0 0.0
    %244 = vmatpush1.msra.mxu0 %v196
    %245 = vmatprep.subr.mxu0 0.0
    %246 = vmatpush1.msra.mxu0 %v195
    %247 = vmatprep.subr.mxu0 0.0
    %248 = vmatpush1.msra.mxu0 %v194
    %249 = vmatprep.subr.mxu0 0.0
    %250 = vmatpush2.msra.mxu0 0.0
    %251 = vmatprep.subr.mxu0 0.0
    %252 = vmatpush2.msra.mxu0 0.0
    %253 = vmatprep.subr.mxu0 0.0
    %254 = vmatpush2.msra.mxu0 0.0
    %255 = vmatprep.subr.mxu0 0.0
    %256 = vmatpush2.msra.mxu0 0.0
    %257 = vmatprep.subr.mxu0 0.0
    %258 = vmatpush2.msra.mxu0 0.0
    %259 = vmatprep.subr.mxu0 0.0
    %260 = vmatpush2.msra.mxu0 0.0
    %261 = vmatprep.subr.mxu0 0.0
    %262 = vmatpush2.msra.mxu0 0.0
    %263 = vmatprep.subr.mxu0 0.0
    %264 = vmatpush2.msra.mxu0 0.0
    %265 = vmatprep.subr.mxu0 0.0
    %266 = vmatpush2.msra.mxu0 0.0
    %267 = vmatprep.subr.mxu0 0.0
    %268 = vmatpush2.msra.mxu0 0.0
    %269 = vmatprep.subr.mxu0 0.0
    %270 = vmatpush2.msra.mxu0 0.0
    %271 = vmatprep.subr.mxu0 0.0
    %272 = vmatpush2.msra.mxu0 0.0
    %273 = vmatprep.subr.mxu0 0.0
    %274 = vmatpush2.msra.mxu0 0.0
    %275 = vmatprep.subr.mxu0 0.0
    %276 = vmatpush2.msra.mxu0 0.0
    %277 = vmatprep.subr.mxu0 0.0
    %278 = vmatpush2.msra.mxu0 0.0
    %279 = vmatprep.subr.mxu0 0.0
    %280 = vmatpush2.msra.mxu0 0.0
    %281 = vmatprep.mubr.f32.mxu0 0.0
    %282 = vmatmul.mubr.f32.gmra.mxu0 %v192
    %v283 = vpop.f32.mrf.mxu0
    %v284 = vadd.f32 %v215, %v283
    %v285 = vpop.f32.mrf.mxu0
    %286 = vmatprep.mubr.f32.mxu0 0.0
    %287 = vmatmul.mubr.f32.gmra.mxu0 %v193
    %v288 = vpop.f32.mrf.mxu0
    %v289 = vadd.f32 %v215, %v288
    %v290 = vpop.f32.mrf.mxu0
    %291 = vdwg.mxu0
    %292 = vst.msk [vmem:[#allocation2] sm:$0xff] %vm46, %v284
    %293 = vst.msk [vmem:[#allocation2 + $0x8] sm:$0xff] %vm46, %v289
    // Predicated region
    $region22: #{siglip_mlp.1} parent=1 // pred_check
      _
    $region23: #{siglip_mlp.1} parent=1 // pred_check_branch
      %295 = sbr.rel (0) target = $region25
    $region24: #{siglip_mlp.1} parent=1 // pred_region
      %s297 = ssub.s32 256, 256
      %298 = vsyncadd [#allocation3], %s297
      %s299 = sshll.u32 [#allocation2], 4
      %s300 = int_to_ptr.vmem [resolvable:$true] %s299
      %305 = dma.vmem_to_hbm [thread:$0]  %s300, 256, %s5, [#allocation3], 128, 128, 8
    $region25: #{siglip_mlp.1} parent=1 // pred_fallthru
      _
    // Predicated region
    $region26: #{siglip_mlp.1} parent=1 // pred_check
      _
    $region27: #{siglip_mlp.1} parent=1 // pred_check_branch
      %307 = sbr.rel (0) target = $region29
    $region28: #{siglip_mlp.1} parent=1 // pred_region
      %308 = dma.done [#allocation3], 256
    $region29: #{siglip_mlp.1} parent=1 // pred_fallthru
      _
    %309 = vsyncpa [#allocation3], 1

</llo_original>
